<compile_context>
chip_gen: v7x
topology: tpu7x:2x2x1
jax: 0.10.0
libtpu: 0.0.40
codegen_flags: <defaults>
</compile_context>

<pallas_src>
import functools

import jax
import jax.numpy as jnp
import numpy as np
from jax.experimental import pallas as pl
from jax.experimental.pallas import tpu as pltpu

LOG_STD_MAX = 2.0
LOG_STD_MIN = -20.0
_LOG2 = float(np.log(2.0))
_HALF_LOG_2PI = 0.5 * float(np.log(2.0 * np.pi))


# ------------------------------------------------------------------ kernel ---
def make_actor_mlp_kernel(n_hidden, sp_dim, act_dim, widths, act_lo, act_hi,
                          deterministic):
    """n_hidden = #Linear layers in self.net; widths[j] = output width of layer j
    (widths[n_hidden] == 2*act_dim for the fused mu/log_std head)."""
    A = act_dim

    def kernel(x_ref, *refs):
        # inputs : x = [s | price (| eps)],
        #          w_0 .. w_{n_hidden-1}  (trunk, bf16, pre-transposed),
        #          w_heads                (fused mu/log_std, bf16),
        #          b_all                  (stacked biases, f32, one row per layer)
        # output : out = [pi_action | logp_pi]   (B, A+1)
        w_refs = refs[: n_hidden + 1]
        b_ref = refs[n_hidden + 1]
        out_ref = refs[n_hidden + 2]

        x = x_ref[...]                                   # f32 (B, S+P [+A])

        # ---- trunk MLP (ReLU after every layer, incl. the last) ----------
        h = x[:, :sp_dim].astype(jnp.bfloat16)
        for j in range(n_hidden):
            z = jnp.dot(h, w_refs[j][...], preferred_element_type=jnp.float32)
            z = z + b_ref[j : j + 1, : widths[j]]
            h = jnp.maximum(z, 0.0).astype(jnp.bfloat16)

        # ---- fused mu / log_std heads: one (H, 2A) matmul, then slice ----
        heads = jnp.dot(h, w_refs[n_hidden][...], preferred_element_type=jnp.float32)
        heads = heads + b_ref[n_hidden : n_hidden + 1, : 2 * A]
        mu = heads[:, :A]
        log_std = jnp.clip(heads[:, A : 2 * A], LOG_STD_MIN, LOG_STD_MAX)

        # ---- reparameterised sample + Gaussian log-prob -------------------
        if deterministic:
            pi = mu
            logp_g = -log_std - _HALF_LOG_2PI            # (pi - mu)/std == 0
        else:
            eps = x[:, sp_dim : sp_dim + A]
            std = jnp.exp(log_std)
            pi = mu + std * eps
            logp_g = -0.5 * eps * eps - log_std - _HALF_LOG_2PI   # (pi-mu)/std == eps

        # ---- tanh-correction (numerically stable softplus) ---------------
        neg2pi = -2.0 * pi
        sp = jnp.maximum(neg2pi, 0.0) + jnp.log1p(jnp.exp(-jnp.abs(neg2pi)))
        corr = 2.0 * (_LOG2 - pi - sp)
        logp = jnp.sum(logp_g - corr, axis=-1, keepdims=True)   # (B, 1)

        # ---- squash + rescale to action limits ----------------------------
        pi_t = jnp.tanh(pi)
        pi_act = act_lo + 0.5 * (pi_t + 1.0) * (act_hi - act_lo)

        # single lane-packed output buffer -> single writeback DMA
        out_ref[:, :A] = pi_act
        out_ref[:, A : A + 1] = logp

    return kernel


# --------------------------------------------------- one-time param layout ---
def prepare_params(params):
    """One-time re-layout of PyTorch-style params into kernel-friendly buffers.

    Runs OUTSIDE the hot path (transposes, head fusion, bias stacking, bf16 cast)."""
    n_hidden = len([k for k in params if k.startswith("w_net")])
    A = int(params["w_mu"].shape[0])
    sp_dim = int(params["w_net0"].shape[1])               # state_dim + price_dim

    weights, widths = [], []
    for j in range(n_hidden):
        weights.append(jnp.asarray(params[f"w_net{j}"]).T.astype(jnp.bfloat16))
        widths.append(int(params[f"w_net{j}"].shape[0]))
    w_heads = jnp.concatenate(
        [params["w_mu"].T, params["w_log_std"].T], axis=1
    ).astype(jnp.bfloat16)                                 # (H_last, 2A)
    weights.append(w_heads)
    widths.append(2 * A)

    max_w = max(widths)
    rows = []
    for j in range(n_hidden):
        b = jnp.asarray(params[f"b_net{j}"], jnp.float32)
        rows.append(jnp.pad(b, (0, max_w - b.shape[0])))
    b_head = jnp.concatenate([params["b_mu"], params["b_log_std"]]).astype(jnp.float32)
    rows.append(jnp.pad(b_head, (0, max_w - b_head.shape[0])))
    biases = jnp.stack(rows)                               # (n_hidden+1, max_w)

    return {
        "weights": tuple(weights),
        "biases": biases,
        "widths": tuple(widths),
        "sp_dim": sp_dim,
        "act_dim": A,
    }


# ----------------------------------------------------------------- forward ---
@functools.partial(
    jax.jit,
    static_argnames=("act_lo", "act_hi", "deterministic", "widths", "sp_dim", "act_dim"),
)
def _actor_forward(weights, biases, obs_net, obs_price, eps,
                   act_lo, act_hi, deterministic, widths, sp_dim, act_dim):
    B = obs_net.shape[0]
    n_hidden = len(weights) - 1

    s = obs_net[:, -1, :].astype(jnp.float32)              # select last timestep
    p = obs_price.astype(jnp.float32)
    if deterministic:
        x = jnp.concatenate([s, p], axis=-1)               # (B, S+P)
    else:
        x = jnp.concatenate([s, p, eps.astype(jnp.float32)], axis=-1)  # (B, S+P+A)

    kernel = make_actor_mlp_kernel(n_hidden, sp_dim, act_dim, widths,
                                   act_lo, act_hi, deterministic)

    n_in = 1 + len(weights) + 1
    out = pl.pallas_call(
        kernel,
        out_shape=jax.ShapeDtypeStruct((B, act_dim + 1), jnp.float32),
        in_specs=[pl.BlockSpec(memory_space=pltpu.MemorySpace.VMEM)] * n_in,
        out_specs=pl.BlockSpec(memory_space=pltpu.MemorySpace.VMEM),
    )(x, *weights, biases)

    return out[:, :act_dim], out[:, act_dim]


def actor_mlp_forward(prep, obs_net, obs_price, eps, act_limit, deterministic=False):
    """prep = prepare_params(params). Returns (pi_action (B,A), logp_pi (B,))."""
    if eps is None:
        eps = jnp.zeros((obs_net.shape[0], prep["act_dim"]), jnp.float32)
    return _actor_forward(
        prep["weights"], prep["biases"], obs_net, obs_price, eps,
        float(act_limit[0]), float(act_limit[1]), bool(deterministic),
        prep["widths"], prep["sp_dim"], prep["act_dim"],
    )


# ----------------------------------------------------------- param builder ---
def init_params(key, state_dim, price_dim, act_dim, hidden_sizes):
    sizes = [state_dim + price_dim] + list(hidden_sizes)
    keys = iter(jax.random.split(key, 4 * len(hidden_sizes) + 8))

    def u(shape, fan_in):
        bound = 1.0 / np.sqrt(fan_in)
        return jax.random.uniform(next(keys), shape, jnp.float32, -bound, bound)

    p = {}
    for j in range(len(sizes) - 1):
        p[f"w_net{j}"] = u((sizes[j + 1], sizes[j]), sizes[j])   # PyTorch (out, in)
        p[f"b_net{j}"] = u((sizes[j + 1],), sizes[j])
    H = hidden_sizes[-1]
    p["w_mu"] = u((act_dim, H), H)
    p["b_mu"] = u((act_dim,), H)
    p["w_log_std"] = u((act_dim, H), H)
    p["b_log_std"] = u((act_dim,), H)
    return p


# ------------------------------------------------------- pure-JAX reference ---
def reference_forward(p, obs_net, obs_price, eps, act_limit, deterministic=False):
    n_hidden = len([k for k in p if k.startswith("w_net")])
    x = jnp.concatenate([obs_net[:, -1, :], obs_price], axis=-1)
    h = x
    for j in range(n_hidden):
        h = jnp.maximum(h @ p[f"w_net{j}"].T + p[f"b_net{j}"], 0.0)   # ReLU incl. output
    mu = h @ p["w_mu"].T + p["b_mu"]
    log_std = jnp.clip(h @ p["w_log_std"].T + p["b_log_std"], LOG_STD_MIN, LOG_STD_MAX)
    std = jnp.exp(log_std)
    pi = mu if deterministic else mu + std * eps
    logp = jnp.sum(
        -0.5 * ((pi - mu) / std) ** 2 - log_std - 0.5 * jnp.log(2.0 * jnp.pi), axis=-1
    )
    logp = logp - jnp.sum(2.0 * (jnp.log(2.0) - pi - jax.nn.softplus(-2.0 * pi)), axis=-1)
    pi_t = jnp.tanh(pi)
    lo, hi = act_limit
    return lo + 0.5 * (pi_t + 1.0) * (hi - lo), logp


# -------------------------------------------------------------------- main ---
if __name__ == "__main__":
    B, T = 2, 8
    state_dim, price_dim, act_dim = 4, 3, 2
    hidden_sizes = [32, 32]
    act_limit = (-2.0, 2.0)

    key = jax.random.PRNGKey(0)
    kp, kx, kpr, ke = jax.random.split(key, 4)

    params = init_params(kp, state_dim, price_dim, act_dim, hidden_sizes)
    prep = prepare_params(params)                 # one-time re-layout (out of hot path)

    obs_net = jax.random.normal(kx, (B, T, state_dim), jnp.float32)
    obs_price = jax.random.normal(kpr, (B, price_dim), jnp.float32)
    eps = jax.random.normal(ke, (B, act_dim), jnp.float32)

    # Kernel uses bf16 MXU operands (f32 accumulation); reference is pure f32,
    # so compare with bf16-level tolerances.
    TOL = dict(rtol=5e-2, atol=5e-2)

    # stochastic path (rsample with shared eps) --------------------------------
    pi_k, logp_k = actor_mlp_forward(prep, obs_net, obs_price, eps, act_limit, False)
    pi_k, logp_k = jax.block_until_ready((pi_k, logp_k))
    pi_r, logp_r = reference_forward(params, obs_net, obs_price, eps, act_limit, False)

    assert pi_k.shape == (B, act_dim) and logp_k.shape == (B,)
    np.testing.assert_allclose(np.asarray(pi_k), np.asarray(pi_r), **TOL)
    np.testing.assert_allclose(np.asarray(logp_k), np.asarray(logp_r), **TOL)

    # deterministic path (static kernel variant: no eps input) -----------------
    pi_kd, logp_kd = actor_mlp_forward(prep, obs_net, obs_price, None, act_limit, True)
    pi_kd, logp_kd = jax.block_until_ready((pi_kd, logp_kd))
    pi_rd, logp_rd = reference_forward(params, obs_net, obs_price, eps, act_limit, True)
    np.testing.assert_allclose(np.asarray(pi_kd), np.asarray(pi_rd), **TOL)
    np.testing.assert_allclose(np.asarray(logp_kd), np.asarray(logp_rd), **TOL)

    # TODO(synk): with_logprob=False path is not specialized; logp is always computed.
    print("KERNEL_OK")
</pallas_src>

<mosaic_0001>
module attributes {stable_mosaic.version = 11 : i64} {
  func.func @kernel(%arg0: memref<2x9xf32, #tpu.memory_space<vmem>>, %arg1: memref<7x32xbf16, #tpu.memory_space<vmem>>, %arg2: memref<32x32xbf16, #tpu.memory_space<vmem>>, %arg3: memref<32x4xbf16, #tpu.memory_space<vmem>>, %arg4: memref<3x32xf32, #tpu.memory_space<vmem>>, %arg5: memref<2x3xf32, #tpu.memory_space<vmem>>) attributes {dimension_semantics = [], scalar_prefetch = 0 : i64, scratch_operands = 0 : i64, tpu.core_type = #tpu.core_type<tc>} {
    %c0 = arith.constant 0 : index
    %c0_0 = arith.constant 0 : index
    %0 = vector.load %arg0[%c0, %c0_0] : memref<2x9xf32, #tpu.memory_space<vmem>>, vector<2x9xf32>
    %1 = vector.extract_strided_slice %0 {offsets = [0, 0], sizes = [2, 7], strides = [1, 1]} : vector<2x9xf32> to vector<2x7xf32>
    %2 = arith.truncf %1 : vector<2x7xf32> to vector<2x7xbf16>
    %c0_1 = arith.constant 0 : index
    %c0_2 = arith.constant 0 : index
    %3 = vector.load %arg1[%c0_1, %c0_2] : memref<7x32xbf16, #tpu.memory_space<vmem>>, vector<7x32xbf16>
    %cst = arith.constant dense<0.000000e+00> : vector<2x32xf32>
    %4 = tpu.matmul %2, %3, %cst {dimension_numbers = #tpu.dot_dimension_numbers<[1], [0], [0], [1], [0, 0, 1, 1], [], []>} : vector<2x7xbf16>, vector<7x32xbf16>, vector<2x32xf32> -> vector<2x32xf32>
    %c0_3 = arith.constant 0 : index
    %c0_4 = arith.constant 0 : index
    %5 = vector.load %arg4[%c0_3, %c0_4] : memref<3x32xf32, #tpu.memory_space<vmem>>, vector<1x32xf32>
    %6 = vector.broadcast %5 : vector<1x32xf32> to vector<2x32xf32>
    %7 = arith.addf %4, %6 : vector<2x32xf32>
    %cst_5 = arith.constant 0.000000e+00 : f32
    %8 = vector.broadcast %cst_5 : f32 to vector<2x32xf32>
    %9 = arith.maximumf %7, %8 : vector<2x32xf32>
    %10 = arith.truncf %9 : vector<2x32xf32> to vector<2x32xbf16>
    %c0_6 = arith.constant 0 : index
    %c0_7 = arith.constant 0 : index
    %11 = vector.load %arg2[%c0_6, %c0_7] : memref<32x32xbf16, #tpu.memory_space<vmem>>, vector<32x32xbf16>
    %cst_8 = arith.constant dense<0.000000e+00> : vector<2x32xf32>
    %12 = tpu.matmul %10, %11, %cst_8 {dimension_numbers = #tpu.dot_dimension_numbers<[1], [0], [0], [1], [0, 0, 1, 1], [], []>} : vector<2x32xbf16>, vector<32x32xbf16>, vector<2x32xf32> -> vector<2x32xf32>
    %c1 = arith.constant 1 : index
    %c0_9 = arith.constant 0 : index
    %13 = vector.load %arg4[%c1, %c0_9] : memref<3x32xf32, #tpu.memory_space<vmem>>, vector<1x32xf32>
    %14 = vector.broadcast %13 : vector<1x32xf32> to vector<2x32xf32>
    %15 = arith.addf %12, %14 : vector<2x32xf32>
    %cst_10 = arith.constant 0.000000e+00 : f32
    %16 = vector.broadcast %cst_10 : f32 to vector<2x32xf32>
    %17 = arith.maximumf %15, %16 : vector<2x32xf32>
    %18 = arith.truncf %17 : vector<2x32xf32> to vector<2x32xbf16>
    %c0_11 = arith.constant 0 : index
    %c0_12 = arith.constant 0 : index
    %19 = vector.load %arg3[%c0_11, %c0_12] : memref<32x4xbf16, #tpu.memory_space<vmem>>, vector<32x4xbf16>
    %cst_13 = arith.constant dense<0.000000e+00> : vector<2x4xf32>
    %20 = tpu.matmul %18, %19, %cst_13 {dimension_numbers = #tpu.dot_dimension_numbers<[1], [0], [0], [1], [0, 0, 1, 1], [], []>} : vector<2x32xbf16>, vector<32x4xbf16>, vector<2x4xf32> -> vector<2x4xf32>
    %c2 = arith.constant 2 : index
    %c0_14 = arith.constant 0 : index
    %21 = vector.load %arg4[%c2, %c0_14] : memref<3x32xf32, #tpu.memory_space<vmem>>, vector<1x4xf32>
    %22 = vector.broadcast %21 : vector<1x4xf32> to vector<2x4xf32>
    %23 = arith.addf %20, %22 : vector<2x4xf32>
    %24 = vector.extract_strided_slice %23 {offsets = [0, 0], sizes = [2, 2], strides = [1, 1]} : vector<2x4xf32> to vector<2x2xf32>
    %25 = vector.extract_strided_slice %23 {offsets = [0, 2], sizes = [2, 2], strides = [1, 1]} : vector<2x4xf32> to vector<2x2xf32>
    %cst_15 = arith.constant -2.000000e+01 : f32
    %cst_16 = arith.constant 2.000000e+00 : f32
    %26 = vector.broadcast %cst_15 : f32 to vector<2x2xf32>
    %27 = arith.maximumf %26, %25 : vector<2x2xf32>
    %28 = vector.broadcast %cst_16 : f32 to vector<2x2xf32>
    %29 = arith.minimumf %28, %27 : vector<2x2xf32>
    %30 = vector.extract_strided_slice %0 {offsets = [0, 7], sizes = [2, 2], strides = [1, 1]} : vector<2x9xf32> to vector<2x2xf32>
    %31 = math.exp %29 : vector<2x2xf32>
    %32 = arith.mulf %31, %30 : vector<2x2xf32>
    %33 = arith.addf %24, %32 : vector<2x2xf32>
    %cst_17 = arith.constant -5.000000e-01 : f32
    %34 = vector.broadcast %cst_17 : f32 to vector<2x2xf32>
    %35 = arith.mulf %34, %30 : vector<2x2xf32>
    %36 = arith.mulf %35, %30 : vector<2x2xf32>
    %37 = arith.subf %36, %29 : vector<2x2xf32>
    %cst_18 = arith.constant 0.918938517 : f32
    %38 = vector.broadcast %cst_18 : f32 to vector<2x2xf32>
    %39 = arith.subf %37, %38 : vector<2x2xf32>
    %cst_19 = arith.constant -2.000000e+00 : f32
    %40 = vector.broadcast %cst_19 : f32 to vector<2x2xf32>
    %41 = arith.mulf %40, %33 : vector<2x2xf32>
    %cst_20 = arith.constant 0.000000e+00 : f32
    %42 = vector.broadcast %cst_20 : f32 to vector<2x2xf32>
    %43 = arith.maximumf %41, %42 : vector<2x2xf32>
    %44 = math.absf %41 : vector<2x2xf32>
    %cst_21 = arith.constant 0.000000e+00 : f32
    %45 = vector.broadcast %cst_21 : f32 to vector<2x2xf32>
    %46 = arith.subf %45, %44 : vector<2x2xf32>
    %47 = math.exp %46 : vector<2x2xf32>
    %48 = math.log1p %47 : vector<2x2xf32>
    %49 = arith.addf %43, %48 : vector<2x2xf32>
    %cst_22 = arith.constant 0.693147182 : f32
    %50 = vector.broadcast %cst_22 : f32 to vector<2x2xf32>
    %51 = arith.subf %50, %33 : vector<2x2xf32>
    %52 = arith.subf %51, %49 : vector<2x2xf32>
    %cst_23 = arith.constant 2.000000e+00 : f32
    %53 = vector.broadcast %cst_23 : f32 to vector<2x2xf32>
    %54 = arith.mulf %53, %52 : vector<2x2xf32>
    %55 = arith.subf %39, %54 : vector<2x2xf32>
    %cst_24 = arith.constant dense<0.000000e+00> : vector<2xf32>
    %56 = vector.multi_reduction <add>, %55, %cst_24 [1] : vector<2x2xf32> to vector<2xf32>
    %57 = vector.shape_cast %56 : vector<2xf32> to vector<2x1xf32>
    %58 = math.tanh %33 : vector<2x2xf32>
    %cst_25 = arith.constant 1.000000e+00 : f32
    %59 = vector.broadcast %cst_25 : f32 to vector<2x2xf32>
    %60 = arith.addf %58, %59 : vector<2x2xf32>
    %cst_26 = arith.constant 5.000000e-01 : f32
    %61 = vector.broadcast %cst_26 : f32 to vector<2x2xf32>
    %62 = arith.mulf %61, %60 : vector<2x2xf32>
    %cst_27 = arith.constant 4.000000e+00 : f32
    %63 = vector.broadcast %cst_27 : f32 to vector<2x2xf32>
    %64 = arith.mulf %62, %63 : vector<2x2xf32>
    %cst_28 = arith.constant -2.000000e+00 : f32
    %65 = vector.broadcast %cst_28 : f32 to vector<2x2xf32>
    %66 = arith.addf %65, %64 : vector<2x2xf32>
    %c0_29 = arith.constant 0 : index
    %c0_30 = arith.constant 0 : index
    %67 = vector.load %arg5[%c0_29, %c0_30] : memref<2x3xf32, #tpu.memory_space<vmem>>, vector<2x2xf32>
    tpu.vector_store %arg5[%c0_29, %c0_30], %66 {strides = array<i32>} : memref<2x3xf32, #tpu.memory_space<vmem>>, vector<2x2xf32>,
    %c0_31 = arith.constant 0 : index
    %c2_32 = arith.constant 2 : index
    %68 = vector.load %arg5[%c0_31, %c2_32] : memref<2x3xf32, #tpu.memory_space<vmem>>, vector<2x1xf32>
    tpu.vector_store %arg5[%c0_31, %c2_32], %57 {strides = array<i32>} : memref<2x3xf32, #tpu.memory_space<vmem>>, vector<2x1xf32>,
    return
  }
}

</mosaic_0001>

<llo_original>
// kernel: _actor_forward.1
$region0: #{_actor_forward.1}
  #allocation0 [shape = 'u32[]', space=smem, size = 0x4, offset = 0x4, fixed_abs, tag = 'smem constant byte address 0x4 - core index']
  #allocation1 [shape = 'u32[144,128]{1,0:T(1,128)}', space=vmem, size = 0x12000, scoped, tag = 'internal scratch']
  %s0 = inlined_call_operand.vmem [shape: f32[2,9], index: 0, kind: input, shape index: {}]
  %s1 = inlined_call_operand.vmem [shape: bf16[7,32], index: 1, kind: input, shape index: {}]
  %s2 = inlined_call_operand.vmem [shape: bf16[32,32], index: 2, kind: input, shape index: {}]
  %s3 = inlined_call_operand.vmem [shape: bf16[32,4], index: 3, kind: input, shape index: {}]
  %s4 = inlined_call_operand.vmem [shape: f32[3,32], index: 4, kind: input, shape index: {}]
  %s5 = inlined_call_operand.vmem [shape: f32[2,3], index: 5, kind: output, shape index: {}]
  %s6 = sld [smem:[#allocation0]]
  $region30: #{_actor_forward.1} parent=0
    _
  %s8 = ssub.s32 1, %s6
  %s9 = scalar_select 0, %s8, %s6
  // Predicated region
  $region2: #{_actor_forward.1} parent=0 // pred_check
    _
  $region3: #{_actor_forward.1} parent=0 // pred_check_branch
    %11 = sbr.rel (0) target = $region5
  $region4: #{_actor_forward.1} parent=0 // pred_region
    _
  $region5: #{_actor_forward.1} parent=0 // pred_fallthru
    _
  // Predicated region
  $region6: #{_actor_forward.1} parent=0 // pred_check
    _
  $region7: #{_actor_forward.1} parent=0 // pred_check_branch
    %13 = sbr.rel (0) target = $region9
  $region8: #{_actor_forward.1} parent=0 // pred_region
    _
  $region9: #{_actor_forward.1} parent=0 // pred_fallthru
    _
  // Predicated region
  $region10: #{_actor_forward.1} parent=0 // pred_check
    _
  $region11: #{_actor_forward.1} parent=0 // pred_check_branch
    %15 = sbr.rel (0) target = $region13
  $region12: #{_actor_forward.1} parent=0 // pred_region
    _
  $region13: #{_actor_forward.1} parent=0 // pred_fallthru
    _
  // Predicated region
  $region14: #{_actor_forward.1} parent=0 // pred_check
    _
  $region15: #{_actor_forward.1} parent=0 // pred_check_branch
    %17 = sbr.rel (0) target = $region17
  $region16: #{_actor_forward.1} parent=0 // pred_region
    _
  $region17: #{_actor_forward.1} parent=0 // pred_fallthru
    _
  // Predicated region
  $region18: #{_actor_forward.1} parent=0 // pred_check
    _
  $region19: #{_actor_forward.1} parent=0 // pred_check_branch
    %19 = sbr.rel (0) target = $region21
  $region20: #{_actor_forward.1} parent=0 // pred_region
    _
  $region21: #{_actor_forward.1} parent=0 // pred_fallthru
    _
  %v21 = vld [vmem:[%s0] sm:$0x3]
  %v22 = vpack.c.bf16 %v21, %v21
  %v23 = vld [vmem:[%s1] sm:$0xf]
  %v24 = vld [vmem:[%s4] sm:$0x1]
  %v25 = vlaneseq
  %v26 = vshrl.u32 %v25, 7
  %v27 = vsub.s32 0, %v26
  %v28 = vrot.slane %v24, %v27
  %vm29 = vcmask 56320
  %v31 = vsel %vm29, %v22, 0
  %vm33 = vcmask 1042432
  %vm34 = vcmask 1043456
  %v35 = vsel %vm33, 4294967295, 65535
  %v36 = vsel %vm34, %v35, 0
  %v38 = vand.u32 %v23, %v36
  %40 = vmatprep.subr.bf16.mxu0 0
  %41 = vmatpush1.bf16.msra.mxu0 %v38
  %42 = vmatprep.subr.bf16.mxu0 0
  %43 = vmatpush1.bf16.msra.mxu0 0
  %44 = vmatprep.subr.bf16.mxu0 0
  %45 = vmatpush1.bf16.msra.mxu0 0
  %46 = vmatprep.subr.bf16.mxu0 0
  %47 = vmatpush1.bf16.msra.mxu0 0
  %48 = vmatprep.subr.bf16.mxu0 0
  %49 = vmatpush1.bf16.msra.mxu0 0
  %50 = vmatprep.subr.bf16.mxu0 0
  %51 = vmatpush1.bf16.msra.mxu0 0
  %52 = vmatprep.subr.bf16.mxu0 0
  %53 = vmatpush1.bf16.msra.mxu0 0
  %54 = vmatprep.subr.bf16.mxu0 0
  %55 = vmatpush1.bf16.msra.mxu0 0
  %56 = vmatprep.subr.bf16.mxu0 0
  %57 = vmatpush1.bf16.msra.mxu0 0
  %58 = vmatprep.subr.bf16.mxu0 0
  %59 = vmatpush1.bf16.msra.mxu0 0
  %60 = vmatprep.subr.bf16.mxu0 0
  %61 = vmatpush1.bf16.msra.mxu0 0
  %62 = vmatprep.subr.bf16.mxu0 0
  %63 = vmatpush1.bf16.msra.mxu0 0
  %64 = vmatprep.subr.bf16.mxu0 0
  %65 = vmatpush1.bf16.msra.mxu0 0
  %66 = vmatprep.subr.bf16.mxu0 0
  %67 = vmatpush1.bf16.msra.mxu0 0
  %68 = vmatprep.subr.bf16.mxu0 0
  %69 = vmatpush1.bf16.msra.mxu0 0
  %70 = vmatprep.subr.bf16.mxu0 0
  %71 = vmatpush1.bf16.msra.mxu0 0
  %72 = vmatprep.mubr.bf16.mxu0 0
  %73 = vmatmul.mubr.bf16.gmra.mrb[0].mxu0 %v31
  %v74 = vpop.f32.mrb[0].mxu0
  %v75 = vadd.f32 %v28, %v74
  %v76 = vpop.f32.mrb[0].mxu0
  %v77 = vpop.f32.mrb[0].mxu0
  %v78 = vpop.f32.mrb[0].mxu0
  %79 = vdwg.mxu0
  %v80 = vmax.f32 %v75, 0.0
  %v81 = vpack.c.bf16 %v80, %v80
  %v82 = vld [vmem:[%s2] sm:$0xf]
  %v83 = vld [vmem:[%s2 + $0x4] sm:$0xf]
  %v84 = vld [vmem:[%s2 + $0x8] sm:$0xf]
  %v85 = vld [vmem:[%s2 + $0xc] sm:$0xf]
  %v86 = vld [vmem:[%s4 + $0x1] sm:$0x1]
  %v87 = vlaneseq
  %v88 = vshrl.u32 %v87, 7
  %v89 = vsub.s32 0, %v88
  %v90 = vrot.slane %v86, %v89
  %v95 = vunpack.c.l.b16 %v82
  %v96 = vunpack.c.l.b16 %v83
  %v97 = vunpack.c.l.b16 %v84
  %v98 = vunpack.c.l.b16 %v85
  %v99 = vpack.c.b16 %v96, %v95
  %v100 = vpack.c.b16 %v98, %v97
  %vm103 = vcmask 261120
  %v105 = vsel %vm103, %v81, 0
  %107 = vmatprep.subr.bf16.mxu0 0
  %108 = vmatpush1.bf16.msra.mxu0 %v99
  %109 = vmatprep.subr.bf16.mxu0 0
  %110 = vmatpush1.bf16.msra.mxu0 %v100
  %111 = vmatprep.subr.bf16.mxu0 0
  %112 = vmatpush1.bf16.msra.mxu0 0
  %113 = vmatprep.subr.bf16.mxu0 0
  %114 = vmatpush1.bf16.msra.mxu0 0
  %115 = vmatprep.subr.bf16.mxu0 0
  %116 = vmatpush1.bf16.msra.mxu0 0
  %117 = vmatprep.subr.bf16.mxu0 0
  %118 = vmatpush1.bf16.msra.mxu0 0
  %119 = vmatprep.subr.bf16.mxu0 0
  %120 = vmatpush1.bf16.msra.mxu0 0
  %121 = vmatprep.subr.bf16.mxu0 0
  %122 = vmatpush1.bf16.msra.mxu0 0
  %123 = vmatprep.subr.bf16.mxu0 0
  %124 = vmatpush1.bf16.msra.mxu0 0
  %125 = vmatprep.subr.bf16.mxu0 0
  %126 = vmatpush1.bf16.msra.mxu0 0
  %127 = vmatprep.subr.bf16.mxu0 0
  %128 = vmatpush1.bf16.msra.mxu0 0
  %129 = vmatprep.subr.bf16.mxu0 0
  %130 = vmatpush1.bf16.msra.mxu0 0
  %131 = vmatprep.subr.bf16.mxu0 0
  %132 = vmatpush1.bf16.msra.mxu0 0
  %133 = vmatprep.subr.bf16.mxu0 0
  %134 = vmatpush1.bf16.msra.mxu0 0
  %135 = vmatprep.subr.bf16.mxu0 0
  %136 = vmatpush1.bf16.msra.mxu0 0
  %137 = vmatprep.subr.bf16.mxu0 0
  %138 = vmatpush1.bf16.msra.mxu0 0
  %139 = vmatprep.mubr.bf16.mxu0 0
  %140 = vmatmul.mubr.bf16.gmra.mrb[0].mxu0 %v105
  %v141 = vpop.f32.mrb[0].mxu0
  %v142 = vadd.f32 %v90, %v141
  %v143 = vpop.f32.mrb[0].mxu0
  %v144 = vpop.f32.mrb[0].mxu0
  %v145 = vpop.f32.mrb[0].mxu0
  %146 = vdwg.mxu0
  %v147 = vmax.f32 %v142, 0.0
  %v148 = vpack.c.bf16 %v147, %v147
  %v149 = vld [vmem:[%s3] sm:$0xf]
  %v150 = vld [vmem:[%s3 + $0x4] sm:$0xf]
  %v151 = vld [vmem:[%s3 + $0x8] sm:$0xf]
  %v152 = vld [vmem:[%s3 + $0xc] sm:$0xf]
  %v153 = vld [vmem:[%s4 + $0x2] sm:$0x1]
  %v154 = vlaneseq
  %v155 = vshrl.u32 %v154, 7
  %v156 = vsub.s32 0, %v155
  %v157 = vrot.slane %v153, %v156
  %v162 = vunpack.c.l.b16 %v149
  %v163 = vunpack.c.l.b16 %v150
  %v164 = vunpack.c.l.b16 %v151
  %v165 = vunpack.c.l.b16 %v152
  %v166 = vpack.c.b16 %v163, %v162
  %v167 = vpack.c.b16 %v165, %v164
  %v171 = vsel %vm103, %v148, 0
  %173 = vmatprep.subr.bf16.mxu0 0
  %174 = vmatpush1.bf16.msra.mxu0 %v166
  %175 = vmatprep.subr.bf16.mxu0 0
  %176 = vmatpush1.bf16.msra.mxu0 %v167
  %177 = vmatprep.subr.bf16.mxu0 0
  %178 = vmatpush1.bf16.msra.mxu0 0
  %179 = vmatprep.subr.bf16.mxu0 0
  %180 = vmatpush1.bf16.msra.mxu0 0
  %181 = vmatprep.subr.bf16.mxu0 0
  %182 = vmatpush1.bf16.msra.mxu0 0
  %183 = vmatprep.subr.bf16.mxu0 0
  %184 = vmatpush1.bf16.msra.mxu0 0
  %185 = vmatprep.subr.bf16.mxu0 0
  %186 = vmatpush1.bf16.msra.mxu0 0
  %187 = vmatprep.subr.bf16.mxu0 0
  %188 = vmatpush1.bf16.msra.mxu0 0
  %189 = vmatprep.subr.bf16.mxu0 0
  %190 = vmatpush1.bf16.msra.mxu0 0
  %191 = vmatprep.subr.bf16.mxu0 0
  %192 = vmatpush1.bf16.msra.mxu0 0
  %193 = vmatprep.subr.bf16.mxu0 0
  %194 = vmatpush1.bf16.msra.mxu0 0
  %195 = vmatprep.subr.bf16.mxu0 0
  %196 = vmatpush1.bf16.msra.mxu0 0
  %197 = vmatprep.subr.bf16.mxu0 0
  %198 = vmatpush1.bf16.msra.mxu0 0
  %199 = vmatprep.subr.bf16.mxu0 0
  %200 = vmatpush1.bf16.msra.mxu0 0
  %201 = vmatprep.subr.bf16.mxu0 0
  %202 = vmatpush1.bf16.msra.mxu0 0
  %203 = vmatprep.subr.bf16.mxu0 0
  %204 = vmatpush1.bf16.msra.mxu0 0
  %205 = vmatprep.mubr.bf16.mxu0 0
  %206 = vmatmul.mubr.bf16.gmra.mrb[0].mxu0 %v171
  %v207 = vpop.f32.mrb[0].mxu0
  %v208 = vadd.f32 %v157, %v207
  %v209 = vpop.f32.mrb[0].mxu0
  %v210 = vpop.f32.mrb[0].mxu0
  %v211 = vpop.f32.mrb[0].mxu0
  %212 = vdwg.mxu0
  %v213 = vmax.f32 %v208, -20.0
  %v214 = vmin.f32 %v213, 2.0
  %v215 = vmul.f32 %v214, 1.442695
  %v216 = vpow.pop %v215
  %218 = vrot.lane.b32.xlu0 %v21, 123
  %v219 = vpop.permute.xlu0 %218
  %v221 = vmul.f32 %v216, %v219
  %223 = vrot.lane.b32.xlu0 %v221, 126
  %v224 = vpop.permute.xlu0 %223
  %v226 = vadd.f32 %v208, %v224
  %v227 = vmul.f32 %v21, -0.5
  %v228 = vmul.f32 %v227, %v21
  %230 = vrot.lane.b32.xlu0 %v214, 5
  %v231 = vpop.permute.xlu0 %230
  %v233 = vsub.f32 %v228, %v231
  %v234 = vsub.f32 %v233, 0.9189385
  %v235 = vmul.f32 %v226, -2.0
  %v236 = vmax.f32 %v235, 0.0
  %v237 = vand.u32 2147483647, %v235
  %v238 = vsub.f32 0.0, %v237
  %v239 = vmul.f32 %v238, 1.442695
  %v240 = vpow.pop %v239
  %v241 = vadd.f32 %v240, 1.0
  %v242 = vlog2.pop %v241
  %v243 = vmul.f32 %v242, 0.6931472
  %v244 = vmul.f32 -0.5, %v240
  %v245 = vadd.f32 %v244, 1.0
  %v246 = vmul.f32 %v245, %v240
  %v247 = vand.u32 2147483647, %v240
  %vm248 = vcmp.lt.f32.partialorder %v247, 0.0004427343
  %v249 = vsel %vm248, %v246, %v243
  %v250 = vadd.f32 %v236, %v249
  %v251 = vsub.f32 0.6931472, %v226
  %v252 = vsub.f32 %v251, %v250
  %v253 = vmul.f32 %v252, 2.0
  %255 = vrot.lane.b32.xlu0 %v253, 7
  %v256 = vpop.permute.xlu0 %255
  %v258 = vsub.f32 %v234, %v256
  %260 = vrot.lane.b32.xlu0 %v258, 121
  %v261 = vpop.permute.xlu0 %260
  %vm263 = vcmask 9216
  %v264 = vsel %vm263, %v261, 0.0
  %265 = vadd.xlane.f32.xlu0 %v264
  %v266 = vpop.xlane.xlu0 %265
  %v267 = vtanh.pop %v226
  %v268 = vadd.f32 %v267, 1.0
  %v269 = vmul.f32 %v268, 0.5
  %v270 = vmul.f32 %v269, 4.0
  %v271 = vadd.f32 %v270, -2.0
  %272 = vst.msk [vmem:[%s5] sm:$0x3] %vm263, %v271
  %vm273 = vcmask 17424
  %274 = vst.msk [vmem:[%s5] sm:$0x3] %vm273, %v266
  // Predicated region
  $region22: #{_actor_forward.1} parent=0 // pred_check
    _
  $region23: #{_actor_forward.1} parent=0 // pred_check_branch
    %276 = sbr.rel (0) target = $region25
  $region24: #{_actor_forward.1} parent=0 // pred_region
    _
  $region25: #{_actor_forward.1} parent=0 // pred_fallthru
    _
  // Predicated region
  $region26: #{_actor_forward.1} parent=0 // pred_check
    _
  $region27: #{_actor_forward.1} parent=0 // pred_check_branch
    %278 = sbr.rel (0) target = $region29
  $region28: #{_actor_forward.1} parent=0 // pred_region
    _
  $region29: #{_actor_forward.1} parent=0 // pred_fallthru
    _

</llo_original>
